<compile_context>
chip_gen: v5e
topology: v5e:2x2
jax: 0.10.0
libtpu: 0.0.40
codegen_flags: <defaults>
</compile_context>

<pallas_src>
import functools

import jax
import jax.numpy as jnp
from jax.experimental import pallas as pl
from jax.experimental.pallas import tpu as pltpu


def _round_up(n, m):
    return (n + m - 1) // m * m


def _actor_kernel(x_ref, w1_ref, b1_ref, w2_ref, b2_ref, wh_ref, bh_ref,
                  out_ref, *, num_action):
    x = x_ref[...]

    # fc1 + ReLU
    h1 = jnp.dot(x, w1_ref[...], preferred_element_type=jnp.float32) + b1_ref[...]
    h1 = jnp.maximum(h1, 0.0)

    # fc2 + ReLU
    h2 = jnp.dot(h1, w2_ref[...], preferred_element_type=jnp.float32) + b2_ref[...]
    h2 = jnp.maximum(h2, 0.0)

    # fused heads: one matmul, lane-dense [bm, HEAD_PAD] result.
    z = jnp.dot(h2, wh_ref[...], preferred_element_type=jnp.float32) + bh_ref[...]

    # lanes [0, A)      -> tanh(z)                (mu)
    # lanes [A, 2A)     -> softplus(z) + 0.001    (std)
    # lanes [2A, PAD)   -> padding (don't care, sliced off in the wrapper)
    lane = jax.lax.broadcasted_iota(jnp.int32, z.shape, 1)
    tanh_part = jnp.tanh(z)
    softplus_part = jnp.maximum(z, 0.0) + jnp.log1p(jnp.exp(-jnp.abs(z))) + 0.001
    out_ref[...] = jnp.where(lane < num_action, tanh_part, softplus_part)


def actor_forward(x, params, *, bm=None):
    """x: [B, num_state] f32. params: dict of weights/biases. Returns (mu, std)."""
    B, S = x.shape
    H = params["w1"].shape[1]
    A = params["wmu"].shape[1]
    head_pad = _round_up(2 * A, 128)  # lane-dense fused head output width

    # Fuse + lane-pad the two heads once in the wrapper (cheap XLA ops).
    w_heads = jnp.zeros((H, head_pad), jnp.float32)
    w_heads = w_heads.at[:, :A].set(params["wmu"]).at[:, A:2 * A].set(params["wstd"])
    b_heads = jnp.zeros((1, head_pad), jnp.float32)
    b_heads = b_heads.at[:, :A].set(params["bmu"]).at[:, A:2 * A].set(params["bstd"])

    # Batch tiling: multiple of 8 sublanes; cap block size, pad B if needed.
    if bm is None:
        bm = min(512, _round_up(B, 8))
    B_pad = _round_up(B, bm)
    if B_pad != B:
        x = jnp.pad(x, ((0, B_pad - B), (0, 0)))

    grid = (B_pad // bm,)
    kernel = functools.partial(_actor_kernel, num_action=A)

    flops = 2 * B_pad * (S * H + H * H + H * head_pad)
    transcendentals = 3 * B_pad * head_pad  # tanh + exp + log1p per output lane
    bytes_accessed = 4 * (B_pad * S + S * H + H + H * H + H
                          + H * head_pad + head_pad + B_pad * head_pad)

    out = pl.pallas_call(
        kernel,
        out_shape=jax.ShapeDtypeStruct((B_pad, head_pad), jnp.float32),
        grid_spec=pltpu.PrefetchScalarGridSpec(
            num_scalar_prefetch=0,
            grid=grid,
            in_specs=[
                # x: tiled over batch
                pl.BlockSpec((bm, S), lambda i: (i, 0)),
                # weights / biases: full-array blocks, VMEM-resident across steps
                pl.BlockSpec((S, H), lambda i: (0, 0)),
                pl.BlockSpec((1, H), lambda i: (0, 0)),
                pl.BlockSpec((H, H), lambda i: (0, 0)),
                pl.BlockSpec((1, H), lambda i: (0, 0)),
                pl.BlockSpec((H, head_pad), lambda i: (0, 0)),
                pl.BlockSpec((1, head_pad), lambda i: (0, 0)),
            ],
            out_specs=pl.BlockSpec((bm, head_pad), lambda i: (i, 0)),
        ),
        compiler_params=pltpu.CompilerParams(
            dimension_semantics=("parallel",),
        ),
        cost_estimate=pl.CostEstimate(
            flops=flops,
            transcendentals=transcendentals,
            bytes_accessed=bytes_accessed,
        ),
    )(x, params["w1"], params["b1"], params["w2"], params["b2"], w_heads, b_heads)

    mu = out[:B, :A]
    std = out[:B, A:2 * A]
    return mu, std


def init_actor_params(key, num_action, num_state, hidden_layer=64):
    """Deterministic init matching nn.Linear shapes (weights stored as [in, out])."""
    ks = jax.random.split(key, 8)

    def linear(kw, kb, fan_in, fan_out):
        bound = 1.0 / jnp.sqrt(fan_in)
        w = jax.random.uniform(kw, (fan_in, fan_out), jnp.float32, -bound, bound)
        b = jax.random.uniform(kb, (1, fan_out), jnp.float32, -bound, bound)
        return w, b

    w1, b1 = linear(ks[0], ks[1], num_state, hidden_layer)
    w2, b2 = linear(ks[2], ks[3], hidden_layer, hidden_layer)
    wmu, bmu = linear(ks[4], ks[5], hidden_layer, num_action)
    wstd, bstd = linear(ks[6], ks[7], hidden_layer, num_action)
    return dict(w1=w1, b1=b1, w2=w2, b2=b2,
                wmu=wmu, bmu=bmu, wstd=wstd, bstd=bstd)


def actor_forward_ref(x, p):
    """Pure-JAX reference for correctness checking."""
    h1 = jax.nn.relu(x @ p["w1"] + p["b1"])
    h2 = jax.nn.relu(h1 @ p["w2"] + p["b2"])
    mu = jnp.tanh(h2 @ p["wmu"] + p["bmu"])
    std = jax.nn.softplus(h2 @ p["wstd"] + p["bstd"]) + 0.001
    return mu, std


def _check(x, params, num_action, **kw):
    mu, std = jax.block_until_ready(actor_forward(x, params, **kw))
    mu_ref, std_ref = actor_forward_ref(x, params)
    assert mu.shape == (x.shape[0], num_action)
    assert std.shape == (x.shape[0], num_action)
    assert jnp.allclose(mu, mu_ref, atol=1e-5, rtol=1e-5)
    assert jnp.allclose(std, std_ref, atol=1e-5, rtol=1e-5)
    assert bool(jnp.all(std > 0.0))


if __name__ == "__main__":
    key = jax.random.PRNGKey(0)
    k_param, k_x1, k_x2 = jax.random.split(key, 3)

    num_state, num_action, hidden = 16, 4, 64
    params = init_actor_params(k_param, num_action, num_state, hidden)

    # Small batch (single grid step).
    x_small = jax.random.normal(k_x1, (8, num_state), jnp.float32)
    _check(x_small, params, num_action)

    # Larger, non-multiple batch forcing batch padding + multi-step grid.
    x_big = jax.random.normal(k_x2, (37, num_state), jnp.float32)
    _check(x_big, params, num_action, bm=8)

    print("KERNEL_OK")
</pallas_src>

<mosaic_0001>
module attributes {stable_mosaic.version = 11 : i64} {
  func.func @_actor_kernel(%arg0: i32, %arg1: memref<8x16xf32, #tpu.memory_space<vmem>>, %arg2: memref<16x64xf32, #tpu.memory_space<vmem>>, %arg3: memref<1x64xf32, #tpu.memory_space<vmem>>, %arg4: memref<64x64xf32, #tpu.memory_space<vmem>>, %arg5: memref<1x64xf32, #tpu.memory_space<vmem>>, %arg6: memref<64x128xf32, #tpu.memory_space<vmem>>, %arg7: memref<1x128xf32, #tpu.memory_space<vmem>>, %arg8: memref<8x128xf32, #tpu.memory_space<vmem>>) attributes {dimension_semantics = [#tpu.dimension_semantics<parallel>], iteration_bounds = array<i64: 1>, scalar_prefetch = 0 : i64, scratch_operands = 0 : i64, tpu.core_type = #tpu.core_type<tc>, window_params = [{transform_indices = @transform_0, window_bounds = array<i64: 8, 16>}, {pipeline_mode = #tpu.pipeline_mode<synchronous>, transform_indices = @transform_1, window_bounds = array<i64: 16, 64>}, {pipeline_mode = #tpu.pipeline_mode<synchronous>, transform_indices = @transform_2, window_bounds = array<i64: 1, 64>}, {pipeline_mode = #tpu.pipeline_mode<synchronous>, transform_indices = @transform_3, window_bounds = array<i64: 64, 64>}, {pipeline_mode = #tpu.pipeline_mode<synchronous>, transform_indices = @transform_4, window_bounds = array<i64: 1, 64>}, {pipeline_mode = #tpu.pipeline_mode<synchronous>, transform_indices = @transform_5, window_bounds = array<i64: 64, 128>}, {pipeline_mode = #tpu.pipeline_mode<synchronous>, transform_indices = @transform_6, window_bounds = array<i64: 1, 128>}, {transform_indices = @transform_7, window_bounds = array<i64: 8, 128>}]} {
    %c0 = arith.constant 0 : index
    %c0_0 = arith.constant 0 : index
    %0 = vector.load %arg1[%c0, %c0_0] : memref<8x16xf32, #tpu.memory_space<vmem>>, vector<8x16xf32>
    %c0_1 = arith.constant 0 : index
    %c0_2 = arith.constant 0 : index
    %1 = vector.load %arg2[%c0_1, %c0_2] : memref<16x64xf32, #tpu.memory_space<vmem>>, vector<16x64xf32>
    %cst = arith.constant dense<0.000000e+00> : vector<8x64xf32>
    %2 = tpu.matmul %0, %1, %cst {dimension_numbers = #tpu.dot_dimension_numbers<[1], [0], [0], [1], [0, 0, 1, 1], [], []>} : vector<8x16xf32>, vector<16x64xf32>, vector<8x64xf32> -> vector<8x64xf32>
    %c0_3 = arith.constant 0 : index
    %c0_4 = arith.constant 0 : index
    %3 = vector.load %arg3[%c0_3, %c0_4] : memref<1x64xf32, #tpu.memory_space<vmem>>, vector<1x64xf32>
    %4 = vector.broadcast %3 : vector<1x64xf32> to vector<8x64xf32>
    %5 = arith.addf %2, %4 : vector<8x64xf32>
    %cst_5 = arith.constant 0.000000e+00 : f32
    %6 = vector.broadcast %cst_5 : f32 to vector<8x64xf32>
    %7 = arith.maximumf %5, %6 : vector<8x64xf32>
    %c0_6 = arith.constant 0 : index
    %c0_7 = arith.constant 0 : index
    %8 = vector.load %arg4[%c0_6, %c0_7] : memref<64x64xf32, #tpu.memory_space<vmem>>, vector<64x64xf32>
    %cst_8 = arith.constant dense<0.000000e+00> : vector<8x64xf32>
    %9 = tpu.matmul %7, %8, %cst_8 {dimension_numbers = #tpu.dot_dimension_numbers<[1], [0], [0], [1], [0, 0, 1, 1], [], []>} : vector<8x64xf32>, vector<64x64xf32>, vector<8x64xf32> -> vector<8x64xf32>
    %c0_9 = arith.constant 0 : index
    %c0_10 = arith.constant 0 : index
    %10 = vector.load %arg5[%c0_9, %c0_10] : memref<1x64xf32, #tpu.memory_space<vmem>>, vector<1x64xf32>
    %11 = vector.broadcast %10 : vector<1x64xf32> to vector<8x64xf32>
    %12 = arith.addf %9, %11 : vector<8x64xf32>
    %cst_11 = arith.constant 0.000000e+00 : f32
    %13 = vector.broadcast %cst_11 : f32 to vector<8x64xf32>
    %14 = arith.maximumf %12, %13 : vector<8x64xf32>
    %c0_12 = arith.constant 0 : index
    %c0_13 = arith.constant 0 : index
    %15 = vector.load %arg6[%c0_12, %c0_13] : memref<64x128xf32, #tpu.memory_space<vmem>>, vector<64x128xf32>
    %cst_14 = arith.constant dense<0.000000e+00> : vector<8x128xf32>
    %16 = tpu.matmul %14, %15, %cst_14 {dimension_numbers = #tpu.dot_dimension_numbers<[1], [0], [0], [1], [0, 0, 1, 1], [], []>} : vector<8x64xf32>, vector<64x128xf32>, vector<8x128xf32> -> vector<8x128xf32>
    %c0_15 = arith.constant 0 : index
    %c0_16 = arith.constant 0 : index
    %17 = vector.load %arg7[%c0_15, %c0_16] : memref<1x128xf32, #tpu.memory_space<vmem>>, vector<1x128xf32>
    %18 = vector.broadcast %17 : vector<1x128xf32> to vector<8x128xf32>
    %19 = arith.addf %16, %18 : vector<8x128xf32>
    %20 = tpu.iota {dimensions = array<i32: 1>} : vector<8x128xi32>
    %21 = math.tanh %19 : vector<8x128xf32>
    %cst_17 = arith.constant 0.000000e+00 : f32
    %22 = vector.broadcast %cst_17 : f32 to vector<8x128xf32>
    %23 = arith.maximumf %19, %22 : vector<8x128xf32>
    %24 = math.absf %19 : vector<8x128xf32>
    %cst_18 = arith.constant 0.000000e+00 : f32
    %25 = vector.broadcast %cst_18 : f32 to vector<8x128xf32>
    %26 = arith.subf %25, %24 : vector<8x128xf32>
    %27 = math.exp %26 : vector<8x128xf32>
    %28 = math.log1p %27 : vector<8x128xf32>
    %29 = arith.addf %23, %28 : vector<8x128xf32>
    %cst_19 = arith.constant 1.000000e-03 : f32
    %30 = vector.broadcast %cst_19 : f32 to vector<8x128xf32>
    %31 = arith.addf %29, %30 : vector<8x128xf32>
    %c4_i32 = arith.constant 4 : i32
    %32 = vector.broadcast %c4_i32 : i32 to vector<8x128xi32>
    %33 = arith.cmpi slt, %20, %32 : vector<8x128xi32>
    %34 = arith.select %33, %21, %31 : vector<8x128xi1>, vector<8x128xf32>
    %c0_20 = arith.constant 0 : index
    %c0_21 = arith.constant 0 : index
    %35 = vector.load %arg8[%c0_20, %c0_21] : memref<8x128xf32, #tpu.memory_space<vmem>>, vector<8x128xf32>
    tpu.vector_store %arg8[%c0_20, %c0_21], %34 {strides = array<i32>} : memref<8x128xf32, #tpu.memory_space<vmem>>, vector<8x128xf32>,
    return
  }
  func.func @transform_0(%arg0: i32) -> (i32, i32) {
    %c0_i32 = arith.constant 0 : i32
    %c0_i32_0 = arith.constant 0 : i32
    return %arg0, %c0_i32 : i32, i32
  }
  func.func @transform_1(%arg0: i32) -> (i32, i32) {
    %c0_i32 = arith.constant 0 : i32
    %c0_i32_0 = arith.constant 0 : i32
    %c0_i32_1 = arith.constant 0 : i32
    return %c0_i32, %c0_i32_0 : i32, i32
  }
  func.func @transform_2(%arg0: i32) -> (i32, i32) {
    %c0_i32 = arith.constant 0 : i32
    %c0_i32_0 = arith.constant 0 : i32
    %c0_i32_1 = arith.constant 0 : i32
    return %c0_i32, %c0_i32_0 : i32, i32
  }
  func.func @transform_3(%arg0: i32) -> (i32, i32) {
    %c0_i32 = arith.constant 0 : i32
    %c0_i32_0 = arith.constant 0 : i32
    %c0_i32_1 = arith.constant 0 : i32
    return %c0_i32, %c0_i32_0 : i32, i32
  }
  func.func @transform_4(%arg0: i32) -> (i32, i32) {
    %c0_i32 = arith.constant 0 : i32
    %c0_i32_0 = arith.constant 0 : i32
    %c0_i32_1 = arith.constant 0 : i32
    return %c0_i32, %c0_i32_0 : i32, i32
  }
  func.func @transform_5(%arg0: i32) -> (i32, i32) {
    %c0_i32 = arith.constant 0 : i32
    %c0_i32_0 = arith.constant 0 : i32
    %c0_i32_1 = arith.constant 0 : i32
    return %c0_i32, %c0_i32_0 : i32, i32
  }
  func.func @transform_6(%arg0: i32) -> (i32, i32) {
    %c0_i32 = arith.constant 0 : i32
    %c0_i32_0 = arith.constant 0 : i32
    %c0_i32_1 = arith.constant 0 : i32
    return %c0_i32, %c0_i32_0 : i32, i32
  }
  func.func @transform_7(%arg0: i32) -> (i32, i32) {
    %c0_i32 = arith.constant 0 : i32
    %c0_i32_0 = arith.constant 0 : i32
    return %arg0, %c0_i32 : i32, i32
  }
}

</mosaic_0001>

<llo_original>
// kernel: tpu_custom_call.1
$region0: #{tpu_custom_call.1}
  #allocation0 [shape = 'u32[]', space=smem, size = 0x4, offset = 0x4, fixed_abs, tag = 'smem constant byte address 0x4 - core index']
  #allocation1 [shape = 'u32[72,128]{1,0:T(1,128)}', space=vmem, size = 0x9000, scoped, tag = 'internal scratch']
  %s0 = inlined_call_operand.hbm [shape: f32[8,16], index: 0, kind: input, shape index: {}]
  %s1 = inlined_call_operand.hbm [shape: f32[16,64], index: 1, kind: input, shape index: {}]
  %s2 = inlined_call_operand.vmem [shape: f32[1,64], index: 2, kind: input, shape index: {}]
  %s3 = inlined_call_operand.hbm [shape: f32[64,64], index: 3, kind: input, shape index: {}]
  %s4 = inlined_call_operand.vmem [shape: f32[1,64], index: 4, kind: input, shape index: {}]
  %s5 = inlined_call_operand.hbm [shape: f32[64,128], index: 5, kind: input, shape index: {}]
  %s6 = inlined_call_operand.vmem [shape: f32[1,128], index: 6, kind: input, shape index: {}]
  %s7 = inlined_call_operand.hbm [shape: f32[8,128], index: 7, kind: output, shape index: {}]
  %s8 = sld [smem:[#allocation0]]
  $region54: #{tpu_custom_call.1} parent=0
    _
  %s10 = ssub.s32 1, %s8
  %s11 = scalar_select 0, %s10, %s8
  $region1: #{tpu_custom_call.1} parent=0
    #allocation2 [shape = 'u8[4096]{0}', space=vmem, size = 0x1000, scoped, tag = 'input window, operand 0, single buffered']
    #allocation3 [shape = 's32[1]{0}', space=sflag, size = 0x4, scoped, tag = 'scoped memory for tpu_custom_call.1']
    #allocation4 [shape = 's32[1]{0}', space=sflag, size = 0x4, scoped, tag = 'scoped memory for tpu_custom_call.1']
    #allocation5 [shape = 'u8[8192]{0}', space=vmem, size = 0x2000, scoped, tag = 'input window, operand 1, single buffered']
    #allocation6 [shape = 's32[1]{0}', space=sflag, size = 0x4, scoped, tag = 'scoped memory for tpu_custom_call.1']
    #allocation7 [shape = 'u8[32768]{0}', space=vmem, size = 0x8000, scoped, tag = 'input window, operand 3, single buffered']
    #allocation8 [shape = 'u8[32768]{0}', space=vmem, size = 0x8000, scoped, tag = 'input window, operand 5, single buffered']
    #allocation9 [shape = 's32[1]{0}', space=sflag, size = 0x4, scoped, tag = 'scoped memory for tpu_custom_call.1']
    #allocation10 [shape = 'u8[4096]{0}', space=vmem, size = 0x1000, scoped, tag = 'output window, operand 0, single buffered']
    %12 = vsyncpa [#allocation3], 0
    %13 = vsyncpa [#allocation6], 0
    %14 = vsyncpa [#allocation9], 0
    %15 = vsyncpa [#allocation4], 0
    // Predicated region
    $region2: #{tpu_custom_call.1} parent=1 // pred_check
      _
    $region3: #{tpu_custom_call.1} parent=1 // pred_check_branch
      %17 = sbr.rel (0) target = $region5
    $region4: #{tpu_custom_call.1} parent=1 // pred_region
      %19 = vsyncadd [#allocation3], 0
      %s21 = sshll.u32 %s0, 4
      %s22 = int_to_ptr.hbm [resolvable:$true] %s21
      %s23 = sshll.u32 [#allocation2], 4
      %s24 = int_to_ptr.vmem [resolvable:$true] %s23
      %26 = dma.hbm_to_vmem [thread:$0]  %s22, 128, %s24, [#allocation3]
    $region5: #{tpu_custom_call.1} parent=1 // pred_fallthru
      _
    // Predicated region
    $region6: #{tpu_custom_call.1} parent=1 // pred_check
      _
    $region7: #{tpu_custom_call.1} parent=1 // pred_check_branch
      %28 = sbr.rel (0) target = $region9
    $region8: #{tpu_custom_call.1} parent=1 // pred_region
      %30 = vsyncadd [#allocation6], 0
      %s31 = sshll.u32 %s1, 4
      %s32 = int_to_ptr.hbm [resolvable:$true] %s31
      %s33 = sshll.u32 [#allocation5], 4
      %s34 = int_to_ptr.vmem [resolvable:$true] %s33
      %39 = dma.hbm_to_vmem [thread:$0]  %s32, 256, %s34, [#allocation6], 128, 128, 8
    $region9: #{tpu_custom_call.1} parent=1 // pred_fallthru
      _
    // Predicated region
    $region10: #{tpu_custom_call.1} parent=1 // pred_check
      _
    $region11: #{tpu_custom_call.1} parent=1 // pred_check_branch
      %41 = sbr.rel (0) target = $region13
    $region12: #{tpu_custom_call.1} parent=1 // pred_region
      _
    $region13: #{tpu_custom_call.1} parent=1 // pred_fallthru
      _
    // Predicated region
    $region14: #{tpu_custom_call.1} parent=1 // pred_check
      _
    $region15: #{tpu_custom_call.1} parent=1 // pred_check_branch
      %43 = sbr.rel (0) target = $region17
    $region16: #{tpu_custom_call.1} parent=1 // pred_region
      %45 = vsyncadd [#allocation6], 0
      %s46 = sshll.u32 %s3, 4
      %s47 = int_to_ptr.hbm [resolvable:$true] %s46
      %s48 = sshll.u32 [#allocation7], 4
      %s49 = int_to_ptr.vmem [resolvable:$true] %s48
      %54 = dma.hbm_to_vmem [thread:$0]  %s47, 1024, %s49, [#allocation6], 128, 128, 8
    $region17: #{tpu_custom_call.1} parent=1 // pred_fallthru
      _
    // Predicated region
    $region18: #{tpu_custom_call.1} parent=1 // pred_check
      _
    $region19: #{tpu_custom_call.1} parent=1 // pred_check_branch
      %56 = sbr.rel (0) target = $region21
    $region20: #{tpu_custom_call.1} parent=1 // pred_region
      _
    $region21: #{tpu_custom_call.1} parent=1 // pred_fallthru
      _
    // Predicated region
    $region22: #{tpu_custom_call.1} parent=1 // pred_check
      _
    $region23: #{tpu_custom_call.1} parent=1 // pred_check_branch
      %58 = sbr.rel (0) target = $region25
    $region24: #{tpu_custom_call.1} parent=1 // pred_region
      %60 = vsyncadd [#allocation9], 0
      %s61 = sshll.u32 %s5, 4
      %s62 = int_to_ptr.hbm [resolvable:$true] %s61
      %s63 = sshll.u32 [#allocation8], 4
      %s64 = int_to_ptr.vmem [resolvable:$true] %s63
      %69 = dma.hbm_to_vmem [thread:$0]  %s62, 1024, %s64, [#allocation9], 128, 128, 8
    $region25: #{tpu_custom_call.1} parent=1 // pred_fallthru
      _
    // Predicated region
    $region26: #{tpu_custom_call.1} parent=1 // pred_check
      _
    $region27: #{tpu_custom_call.1} parent=1 // pred_check_branch
      %71 = sbr.rel (0) target = $region29
    $region28: #{tpu_custom_call.1} parent=1 // pred_region
      _
    $region29: #{tpu_custom_call.1} parent=1 // pred_fallthru
      _
    // Predicated region
    $region30: #{tpu_custom_call.1} parent=1 // pred_check
      _
    $region31: #{tpu_custom_call.1} parent=1 // pred_check_branch
      %73 = sbr.rel (0) target = $region33
    $region32: #{tpu_custom_call.1} parent=1 // pred_region
      %75 = dma.done [#allocation3], 128
    $region33: #{tpu_custom_call.1} parent=1 // pred_fallthru
      _
    // Predicated region
    $region34: #{tpu_custom_call.1} parent=1 // pred_check
      _
    $region35: #{tpu_custom_call.1} parent=1 // pred_check_branch
      %77 = sbr.rel (0) target = $region37
    $region36: #{tpu_custom_call.1} parent=1 // pred_region
      %79 = dma.done [#allocation6], 256
    $region37: #{tpu_custom_call.1} parent=1 // pred_fallthru
      _
    // Predicated region
    $region38: #{tpu_custom_call.1} parent=1 // pred_check
      _
    $region39: #{tpu_custom_call.1} parent=1 // pred_check_branch
      %81 = sbr.rel (0) target = $region41
    $region40: #{tpu_custom_call.1} parent=1 // pred_region
      %83 = dma.done [#allocation6], 1024
    $region41: #{tpu_custom_call.1} parent=1 // pred_fallthru
      _
    // Predicated region
    $region42: #{tpu_custom_call.1} parent=1 // pred_check
      _
    $region43: #{tpu_custom_call.1} parent=1 // pred_check_branch
      %85 = sbr.rel (0) target = $region45
    $region44: #{tpu_custom_call.1} parent=1 // pred_region
      %87 = dma.done [#allocation9], 1024
    $region45: #{tpu_custom_call.1} parent=1 // pred_fallthru
      _
    %v88 = vld [vmem:[#allocation2] sm:$0xff]
    %v89 = vld [vmem:[#allocation5] sm:$0xff]
    %v90 = vld [vmem:[#allocation5 + $0x8] sm:$0xff]
    %v91 = vld [vmem:[%s2] sm:$0x1]
    %v93 = vperm.slane %v91, 0
    %vm95 = vcmask 130048
    %v97 = vsel %vm95, %v88, 0
    %99 = vmatpush.msra.mxu0 0.0
    %100 = vmatpush.msra.mxu0 0.0
    %101 = vmatpush.msra.mxu0 0.0
    %102 = vmatpush.msra.mxu0 0.0
    %103 = vmatpush.msra.mxu0 0.0
    %104 = vmatpush.msra.mxu0 0.0
    %105 = vmatpush.msra.mxu0 0.0
    %106 = vmatpush.msra.mxu0 0.0
    %107 = vmatpush.msra.mxu0 0.0
    %108 = vmatpush.msra.mxu0 0.0
    %109 = vmatpush.msra.mxu0 0.0
    %110 = vmatpush.msra.mxu0 0.0
    %111 = vmatpush.msra.mxu0 0.0
    %112 = vmatpush.msra.mxu0 0.0
    %113 = vmatpush.msra.mxu0 %v90
    %114 = vmatpush.msra.mxu0 %v89
    %115 = vmatmul.f32.gmra.mxu0 %v97
    %v116 = vpop.f32.mrf.mxu0
    %v117 = vadd.f32 %v93, %v116
    %118 = vdwg.mxu0
    %v119 = vmax.f32 %v117, 0.0
    %v120 = vld [vmem:[#allocation7] sm:$0xff]
    %v121 = vld [vmem:[#allocation7 + $0x8] sm:$0xff]
    %v122 = vld [vmem:[#allocation7 + $0x10] sm:$0xff]
    %v123 = vld [vmem:[#allocation7 + $0x18] sm:$0xff]
    %v124 = vld [vmem:[#allocation7 + $0x20] sm:$0xff]
    %v125 = vld [vmem:[#allocation7 + $0x28] sm:$0xff]
    %v126 = vld [vmem:[#allocation7 + $0x30] sm:$0xff]
    %v127 = vld [vmem:[#allocation7 + $0x38] sm:$0xff]
    %v128 = vld [vmem:[%s4] sm:$0x1]
    %v130 = vperm.slane %v128, 0
    %vm132 = vcmask 523264
    %v134 = vsel %vm132, %v119, 0
    %136 = vmatpush.msra.mxu0 0.0
    %137 = vmatpush.msra.mxu0 0.0
    %138 = vmatpush.msra.mxu0 0.0
    %139 = vmatpush.msra.mxu0 0.0
    %140 = vmatpush.msra.mxu0 0.0
    %141 = vmatpush.msra.mxu0 0.0
    %142 = vmatpush.msra.mxu0 0.0
    %143 = vmatpush.msra.mxu0 0.0
    %144 = vmatpush.msra.mxu0 %v127
    %145 = vmatpush.msra.mxu0 %v126
    %146 = vmatpush.msra.mxu0 %v125
    %147 = vmatpush.msra.mxu0 %v124
    %148 = vmatpush.msra.mxu0 %v123
    %149 = vmatpush.msra.mxu0 %v122
    %150 = vmatpush.msra.mxu0 %v121
    %151 = vmatpush.msra.mxu0 %v120
    %152 = vmatmul.f32.gmra.mxu0 %v134
    %v153 = vpop.f32.mrf.mxu0
    %v154 = vadd.f32 %v130, %v153
    %155 = vdwg.mxu0
    %v156 = vmax.f32 %v154, 0.0
    %v157 = vld [vmem:[#allocation8] sm:$0xff]
    %v158 = vld [vmem:[#allocation8 + $0x8] sm:$0xff]
    %v159 = vld [vmem:[#allocation8 + $0x10] sm:$0xff]
    %v160 = vld [vmem:[#allocation8 + $0x18] sm:$0xff]
    %v161 = vld [vmem:[#allocation8 + $0x20] sm:$0xff]
    %v162 = vld [vmem:[#allocation8 + $0x28] sm:$0xff]
    %v163 = vld [vmem:[#allocation8 + $0x30] sm:$0xff]
    %v164 = vld [vmem:[#allocation8 + $0x38] sm:$0xff]
    %v165 = vld [vmem:[%s6] sm:$0x1]
    %v167 = vperm.slane %v165, 0
    %v170 = vsel %vm132, %v156, 0
    %172 = vmatpush.msra.mxu0 0.0
    %173 = vmatpush.msra.mxu0 0.0
    %174 = vmatpush.msra.mxu0 0.0
    %175 = vmatpush.msra.mxu0 0.0
    %176 = vmatpush.msra.mxu0 0.0
    %177 = vmatpush.msra.mxu0 0.0
    %178 = vmatpush.msra.mxu0 0.0
    %179 = vmatpush.msra.mxu0 0.0
    %180 = vmatpush.msra.mxu0 %v164
    %181 = vmatpush.msra.mxu0 %v163
    %182 = vmatpush.msra.mxu0 %v162
    %183 = vmatpush.msra.mxu0 %v161
    %184 = vmatpush.msra.mxu0 %v160
    %185 = vmatpush.msra.mxu0 %v159
    %186 = vmatpush.msra.mxu0 %v158
    %187 = vmatpush.msra.mxu0 %v157
    %188 = vmatmul.f32.gmra.mxu0 %v170
    %v189 = vpop.f32.mrf.mxu0
    %v190 = vadd.f32 %v167, %v189
    %191 = vdwg.mxu0
    %v192 = vlaneseq
    %v193 = vand.u32 %v192, 127
    %v194 = vtanh.pop %v190
    %v195 = vmax.f32 %v190, 0.0
    %v196 = vand.u32 2147483647, %v190
    %v197 = vsub.f32 0.0, %v196
    %v198 = vmul.f32 %v197, 1.442695
    %v199 = vpow.pop %v198
    %v200 = vadd.f32 %v199, 1.0
    %v201 = vlog2.pop %v200
    %v202 = vmul.f32 %v201, 0.6931472
    %v203 = vmul.f32 -0.5, %v199
    %v204 = vadd.f32 %v203, 1.0
    %v205 = vmul.f32 %v204, %v199
    %v206 = vand.u32 2147483647, %v199
    %vm207 = vcmp.lt.f32.partialorder %v206, 0.0004427343
    %v208 = vsel %vm207, %v205, %v202
    %v209 = vadd.f32 %v195, %v208
    %v210 = vadd.f32 %v209, 0.001
    %vm211 = vcmp.lt.s32.totalorder %v193, 4
    %v212 = vsel %vm211, %v194, %v210
    %213 = vst [vmem:[#allocation10] sm:$0xff] %v212
    // Predicated region
    $region46: #{tpu_custom_call.1} parent=1 // pred_check
      _
    $region47: #{tpu_custom_call.1} parent=1 // pred_check_branch
      %215 = sbr.rel (0) target = $region49
    $region48: #{tpu_custom_call.1} parent=1 // pred_region
      %217 = vsyncadd [#allocation4], 0
      %s219 = sshll.u32 [#allocation10], 4
      %s220 = int_to_ptr.vmem [resolvable:$true] %s219
      %s221 = sshll.u32 %s7, 4
      %s222 = int_to_ptr.hbm [resolvable:$true] %s221
      %224 = dma.vmem_to_hbm [thread:$0]  %s220, 128, %s222, [#allocation4]
    $region49: #{tpu_custom_call.1} parent=1 // pred_fallthru
      _
    // Predicated region
    $region50: #{tpu_custom_call.1} parent=1 // pred_check
      _
    $region51: #{tpu_custom_call.1} parent=1 // pred_check_branch
      %226 = sbr.rel (0) target = $region53
    $region52: #{tpu_custom_call.1} parent=1 // pred_region
      %228 = dma.done [#allocation4], 128
    $region53: #{tpu_custom_call.1} parent=1 // pred_fallthru
      _
    %229 = vsyncpa [#allocation3], 1
    %230 = vsyncpa [#allocation6], 1
    %231 = vsyncpa [#allocation9], 1
    %232 = vsyncpa [#allocation4], 1

</llo_original>
